<compile_context>
chip_gen: v6e
topology: v6e:2x2x1
jax: 0.10.0
libtpu: 0.0.40
codegen_flags: <defaults>
</compile_context>

<pallas_src>
import jax
import jax.numpy as jnp
from jax.experimental import pallas as pl
from jax.experimental.pallas import tpu as pltpu


def _round_up(x, m):
    return ((x + m - 1) // m) * m


def _tpu_compiler_params(dimension_semantics):
    # Only attach Mosaic compiler params when actually lowering for TPU; the
    # CPU/interpret fallback some sandboxes use does not need them.
    if jax.devices()[0].platform == "tpu":
        return pltpu.CompilerParams(
            dimension_semantics=dimension_semantics,
            vmem_limit_bytes=32 * 1024 * 1024)
    return None


# ----------------------------------------------------------------------------
# Kernel 1: im2col conv (matmul) + bias + ReLU + fused global average pool
# ----------------------------------------------------------------------------
def _conv_relu_pool(patches, w_mat, b_row, *, valid_rows, tile_rows):
    """patches: (B, P_pad, Kpad) bf16, w_mat: (Kpad, Cout) bf16, b_row: (1, Cout) f32.
    Returns spatial mean of relu(conv) as (B, 1, Cout) f32."""
    B, P_pad, Kpad = patches.shape
    Cout = w_mat.shape[1]
    TS = tile_rows
    assert P_pad % TS == 0
    n_s = P_pad // TS
    inv_p = 1.0 / float(valid_rows)
    need_mask = (P_pad != valid_rows)

    def kernel(p_ref, w_ref, b_ref, o_ref):
        s = pl.program_id(1)

        @pl.when(s == 0)
        def _init():
            o_ref[...] = jnp.zeros_like(o_ref)

        x = p_ref[0]                                                # (TS, Kpad) bf16
        y = jnp.dot(x, w_ref[...], preferred_element_type=jnp.float32)
        y = jnp.maximum(y + b_ref[...], 0.0)                        # (TS, Cout) f32
        if need_mask:                                               # mask padded rows
            row = s * TS + jax.lax.broadcasted_iota(jnp.int32, (TS, 1), 0)
            y = jnp.where(row < valid_rows, y, 0.0)
        o_ref[...] += jnp.sum(y, axis=0, keepdims=True)[None]       # (1,1,Cout)

        @pl.when(s == n_s - 1)
        def _finalize():
            o_ref[...] = o_ref[...] * inv_p

    return pl.pallas_call(
        kernel,
        out_shape=jax.ShapeDtypeStruct((B, 1, Cout), jnp.float32),
        grid=(B, n_s),
        in_specs=[
            pl.BlockSpec((1, TS, Kpad), lambda b, s: (b, s, 0)),    # streamed row tiles
            pl.BlockSpec((Kpad, Cout), lambda b, s: (0, 0)),        # resident weight
            pl.BlockSpec((1, Cout), lambda b, s: (0, 0)),           # resident bias
        ],
        out_specs=pl.BlockSpec((1, 1, Cout), lambda b, s: (b, 0, 0)),  # pooled accumulator
        compiler_params=_tpu_compiler_params(("parallel", "arbitrary")),
    )(patches, w_mat, b_row)


# ----------------------------------------------------------------------------
# Kernel 2: fc (Linear) + ReLU + Dropout(0.5) via precomputed mask, fused
# ----------------------------------------------------------------------------
def _fc_relu_dropout(x, w_t, b_row, mask):
    B = x.shape[0]
    E = w_t.shape[1]

    def kernel(x_ref, w_ref, b_ref, m_ref, o_ref):
        y = jnp.dot(x_ref[...], w_ref[...], preferred_element_type=jnp.float32)
        y = jnp.maximum(y + b_ref[...], 0.0)
        o_ref[...] = (y * m_ref[...]).astype(o_ref.dtype)

    return pl.pallas_call(
        kernel,
        out_shape=jax.ShapeDtypeStruct((B, E), jnp.float32),
        in_specs=[pl.BlockSpec(memory_space=pltpu.MemorySpace.VMEM)] * 4,
        out_specs=pl.BlockSpec(memory_space=pltpu.MemorySpace.VMEM),
    )(x, w_t, b_row, mask)


# ----------------------------------------------------------------------------
# Glue: im2col (pure data movement, plain JAX)
# ----------------------------------------------------------------------------
def im2col(x_nhwc, kh, kw, stride):
    B, H, W, C = x_nhwc.shape
    OH = (H - kh) // stride + 1
    OW = (W - kw) // stride + 1
    cols = []
    for i in range(kh):
        for j in range(kw):
            cols.append(
                x_nhwc[:, i:i + stride * OH:stride, j:j + stride * OW:stride, :])
    patches = jnp.concatenate(cols, axis=-1)          # (B, OH, OW, KH*KW*C)
    return patches.reshape(B, OH * OW, kh * kw * C), OH, OW


# ----------------------------------------------------------------------------
# EncoderCNN
# ----------------------------------------------------------------------------
class EncoderCNN:
    """JAX/Pallas port of EncoderCNN.forward."""

    def __init__(self, embed_size, key, in_channels=3, stem_channels=256,
                 ksize=3, stride=2, train_cnn=False):
        self.train_cnn = train_cnn          # torch: only toggles requires_grad
        self.ksize = ksize
        self.stride = stride
        self.stem_channels = stem_channels
        self.embed_size = embed_size
        self.in_channels = in_channels

        k1, k2 = jax.random.split(key)
        K = in_channels * ksize * ksize
        self.k_raw = K
        self.k_pad = _round_up(K, 32)       # lane-friendlier contraction dim

        # torch conv layout (Cout, Cin, KH, KW) -> (KH*KW*Cin, Cout), zero-padded,
        # stored bf16 (MXU-native; halves HBM/VMEM traffic of the hot operand).
        conv_w = (jax.random.normal(
            k1, (stem_channels, in_channels, ksize, ksize), jnp.float32)
            * (1.0 / jnp.sqrt(K)))
        w_km = jnp.transpose(conv_w, (2, 3, 1, 0)).reshape(K, stem_channels)
        self.conv_w_mat = jnp.pad(
            w_km, ((0, self.k_pad - K), (0, 0))).astype(jnp.bfloat16)
        self.conv_b_row = jnp.zeros((1, stem_channels), jnp.float32)

        # torch Linear layout (out, in) -> pre-transposed once at init, bf16.
        fc_w = (jax.random.normal(
            k2, (embed_size, stem_channels), jnp.float32)
            * (1.0 / jnp.sqrt(stem_channels)))
        self.fc_w_t = fc_w.T.astype(jnp.bfloat16)
        self.fc_b_row = jnp.zeros((1, embed_size), jnp.float32)

    # shared preprocessing -----------------------------------------------
    def _prepare_patches(self, images_nchw):
        x = jnp.transpose(images_nchw, (0, 2, 3, 1))          # NCHW -> NHWC
        patches, OH, OW = im2col(x, self.ksize, self.ksize, self.stride)
        B, P, K = patches.shape
        TS = min(512, _round_up(P, 16))                       # pipeline row tiles
        P_pad = _round_up(P, TS)
        patches = jnp.pad(patches,
                          ((0, 0), (0, P_pad - P), (0, self.k_pad - K)))
        return patches.astype(jnp.bfloat16), P, TS

    def _dropout_mask(self, key, shape, training):
        if not training:                                      # torch eval(): no dropout
            return jnp.ones(shape, jnp.float32)
        if key is None:
            key = jax.random.PRNGKey(0)
        keep = jax.random.bernoulli(key, 0.5, shape)
        return keep.astype(jnp.float32) * 2.0                 # inverted dropout

    # Pallas forward --------------------------------------------------------
    def __call__(self, images_nchw, dropout_key=None, training=True):
        patches, P, TS = self._prepare_patches(images_nchw)
        pooled = _conv_relu_pool(patches, self.conv_w_mat, self.conv_b_row,
                                 valid_rows=P, tile_rows=TS)          # (B, 1, C)
        pooled = pooled.reshape(pooled.shape[0], self.stem_channels)
        mask = self._dropout_mask(
            dropout_key, (pooled.shape[0], self.embed_size), training)
        return _fc_relu_dropout(pooled.astype(jnp.bfloat16), self.fc_w_t,
                                self.fc_b_row, mask)
        # (torch forward also toggles requires_grad; autograd flag only, no
        #  effect on forward values -- omitted.)

    # pure-JAX reference for correctness checking ---------------------------
    def reference(self, images_nchw, dropout_key=None, training=True):
        patches, P, _ = self._prepare_patches(images_nchw)
        x = patches.astype(jnp.float32)
        w = self.conv_w_mat.astype(jnp.float32)
        conv = jnp.maximum(
            jnp.einsum('bpk,kc->bpc', x, w) + self.conv_b_row[0], 0.0)
        pooled = conv[:, :P, :].mean(axis=1)
        xb = pooled.astype(jnp.bfloat16).astype(jnp.float32)
        wb = self.fc_w_t.astype(jnp.float32)
        y = jnp.maximum(xb @ wb + self.fc_b_row[0], 0.0)
        mask = self._dropout_mask(dropout_key, y.shape, training)
        return y * mask


if __name__ == "__main__":
    key = jax.random.PRNGKey(0)
    k_img, k_params, k_drop = jax.random.split(key, 3)

    B, C, H, W = 2, 3, 32, 32          # small stand-in for (N, 3, 299, 299)
    embed_size = 128

    images = jax.random.normal(k_img, (B, C, H, W), dtype=jnp.float32)
    encoder = EncoderCNN(embed_size, k_params)

    out = encoder(images, dropout_key=k_drop, training=True)
    out = jax.block_until_ready(out)

    assert out.shape == (B, embed_size), out.shape
    assert out.dtype == jnp.float32
    assert bool(jnp.all(jnp.isfinite(out)))
    assert bool(jnp.all(out >= 0.0))    # ReLU (+ nonneg dropout mask)

    ref = encoder.reference(images, dropout_key=k_drop, training=True)
    assert bool(jnp.allclose(out, ref, rtol=5e-2, atol=5e-2)), \
        float(jnp.max(jnp.abs(out - ref)))

    # eval-mode (no dropout) path also runs cleanly
    out_eval = jax.block_until_ready(encoder(images, training=False))
    assert out_eval.shape == (B, embed_size)

    print("KERNEL_OK")
</pallas_src>

<mosaic_0001>
module attributes {stable_mosaic.version = 11 : i64} {
  func.func @kernel(%arg0: i32, %arg1: i32, %arg2: memref<1x240x32xbf16, #tpu.memory_space<vmem>>, %arg3: memref<32x256xbf16, #tpu.memory_space<vmem>>, %arg4: memref<1x256xf32, #tpu.memory_space<vmem>>, %arg5: memref<1x1x256xf32, #tpu.memory_space<vmem>>) attributes {dimension_semantics = [#tpu.dimension_semantics<arbitrary>, #tpu.dimension_semantics<arbitrary>], iteration_bounds = array<i64: 2, 1>, scalar_prefetch = 0 : i64, scratch_operands = 0 : i64, tpu.core_type = #tpu.core_type<tc>, window_params = [{transform_indices = @transform_0, window_bounds = array<i64: 1, 240, 32>}, {pipeline_mode = #tpu.pipeline_mode<synchronous>, transform_indices = @transform_1, window_bounds = array<i64: 32, 256>}, {pipeline_mode = #tpu.pipeline_mode<synchronous>, transform_indices = @transform_2, window_bounds = array<i64: 1, 256>}, {transform_indices = @transform_3, window_bounds = array<i64: 1, 1, 256>}]} {
    %c0_i32 = arith.constant 0 : i32
    %0 = arith.cmpi eq, %arg1, %c0_i32 : i32
    %1 = arith.extui %0 : i1 to i32
    %c0_i32_0 = arith.constant 0 : i32
    %2 = arith.cmpi ne, %1, %c0_i32_0 : i32
    scf.if %2 {
      %cst_18 = arith.constant 0.000000e+00 : f32
      %31 = vector.broadcast %cst_18 : f32 to vector<1x1x256xf32>
      %c0_19 = arith.constant 0 : index
      %c0_20 = arith.constant 0 : index
      %c0_21 = arith.constant 0 : index
      %32 = vector.load %arg5[%c0_19, %c0_20, %c0_21] : memref<1x1x256xf32, #tpu.memory_space<vmem>>, vector<1x1x256xf32>
      tpu.vector_store %arg5[%c0_19, %c0_20, %c0_21], %31 {strides = array<i32>} : memref<1x1x256xf32, #tpu.memory_space<vmem>>, vector<1x1x256xf32>,
    } else {
    }
    %c0 = arith.constant 0 : index
    %c0_1 = arith.constant 0 : index
    %c0_2 = arith.constant 0 : index
    %3 = vector.load %arg2[%c0, %c0_1, %c0_2] : memref<1x240x32xbf16, #tpu.memory_space<vmem>>, vector<1x240x32xbf16>
    %4 = vector.shape_cast %3 : vector<1x240x32xbf16> to vector<240x32xbf16>
    %c0_3 = arith.constant 0 : index
    %c0_4 = arith.constant 0 : index
    %5 = vector.load %arg3[%c0_3, %c0_4] : memref<32x256xbf16, #tpu.memory_space<vmem>>, vector<32x256xbf16>
    %cst = arith.constant dense<0.000000e+00> : vector<240x256xf32>
    %6 = tpu.matmul %4, %5, %cst {dimension_numbers = #tpu.dot_dimension_numbers<[1], [0], [0], [1], [0, 0, 1, 1], [], []>} : vector<240x32xbf16>, vector<32x256xbf16>, vector<240x256xf32> -> vector<240x256xf32>
    %c0_5 = arith.constant 0 : index
    %c0_6 = arith.constant 0 : index
    %7 = vector.load %arg4[%c0_5, %c0_6] : memref<1x256xf32, #tpu.memory_space<vmem>>, vector<1x256xf32>
    %8 = vector.broadcast %7 : vector<1x256xf32> to vector<240x256xf32>
    %9 = arith.addf %6, %8 : vector<240x256xf32>
    %cst_7 = arith.constant 0.000000e+00 : f32
    %10 = vector.broadcast %cst_7 : f32 to vector<240x256xf32>
    %11 = arith.maximumf %9, %10 : vector<240x256xf32>
    %c240_i32 = arith.constant 240 : i32
    %12 = arith.muli %arg1, %c240_i32 : i32
    %13 = tpu.iota {dimensions = array<i32: 0>} : vector<240x1xi32>
    %14 = vector.broadcast %12 : i32 to vector<240x1xi32>
    %15 = arith.addi %14, %13 : vector<240x1xi32>
    %c225_i32 = arith.constant 225 : i32
    %16 = vector.broadcast %c225_i32 : i32 to vector<240x1xi32>
    %17 = arith.cmpi slt, %15, %16 : vector<240x1xi32>
    %cst_8 = arith.constant 0.000000e+00 : f32
    %18 = vector.shape_cast %17 : vector<240x1xi1> to vector<240x1xi1>
    %19 = vector.broadcast %18 : vector<240x1xi1> to vector<240x256xi1>
    %20 = vector.broadcast %cst_8 : f32 to vector<240x256xf32>
    %21 = arith.select %19, %11, %20 : vector<240x256xi1>, vector<240x256xf32>
    %c0_9 = arith.constant 0 : index
    %c0_10 = arith.constant 0 : index
    %c0_11 = arith.constant 0 : index
    %22 = vector.load %arg5[%c0_9, %c0_10, %c0_11] : memref<1x1x256xf32, #tpu.memory_space<vmem>>, vector<1x1x256xf32>
    %cst_12 = arith.constant dense<0.000000e+00> : vector<256xf32>
    %23 = vector.multi_reduction <add>, %21, %cst_12 [0] : vector<240x256xf32> to vector<256xf32>
    %24 = vector.shape_cast %23 : vector<256xf32> to vector<1x256xf32>
    %25 = vector.shape_cast %24 : vector<1x256xf32> to vector<1x1x256xf32>
    %26 = arith.addf %22, %25 : vector<1x1x256xf32>
    %c0_13 = arith.constant 0 : index
    %c0_14 = arith.constant 0 : index
    %c0_15 = arith.constant 0 : index
    %27 = vector.load %arg5[%c0_13, %c0_14, %c0_15] : memref<1x1x256xf32, #tpu.memory_space<vmem>>, vector<1x1x256xf32>
    tpu.vector_store %arg5[%c0_13, %c0_14, %c0_15], %26 {strides = array<i32>} : memref<1x1x256xf32, #tpu.memory_space<vmem>>, vector<1x1x256xf32>,
    %c0_i32_16 = arith.constant 0 : i32
    %28 = arith.cmpi eq, %arg1, %c0_i32_16 : i32
    %29 = arith.extui %28 : i1 to i32
    %c0_i32_17 = arith.constant 0 : i32
    %30 = arith.cmpi ne, %29, %c0_i32_17 : i32
    scf.if %30 {
      %c0_18 = arith.constant 0 : index
      %c0_19 = arith.constant 0 : index
      %c0_20 = arith.constant 0 : index
      %31 = vector.load %arg5[%c0_18, %c0_19, %c0_20] : memref<1x1x256xf32, #tpu.memory_space<vmem>>, vector<1x1x256xf32>
      %cst_21 = arith.constant 0.00444444455 : f32
      %32 = vector.broadcast %cst_21 : f32 to vector<1x1x256xf32>
      %33 = arith.mulf %31, %32 : vector<1x1x256xf32>
      %c0_22 = arith.constant 0 : index
      %c0_23 = arith.constant 0 : index
      %c0_24 = arith.constant 0 : index
      %34 = vector.load %arg5[%c0_22, %c0_23, %c0_24] : memref<1x1x256xf32, #tpu.memory_space<vmem>>, vector<1x1x256xf32>
      tpu.vector_store %arg5[%c0_22, %c0_23, %c0_24], %33 {strides = array<i32>} : memref<1x1x256xf32, #tpu.memory_space<vmem>>, vector<1x1x256xf32>,
    } else {
    }
    return
  }
  func.func @transform_0(%arg0: i32, %arg1: i32) -> (i32, i32, i32) {
    %c0_i32 = arith.constant 0 : i32
    %c0_i32_0 = arith.constant 0 : i32
    return %arg0, %arg1, %c0_i32 : i32, i32, i32
  }
  func.func @transform_1(%arg0: i32, %arg1: i32) -> (i32, i32) {
    %c0_i32 = arith.constant 0 : i32
    %c0_i32_0 = arith.constant 0 : i32
    %c0_i32_1 = arith.constant 0 : i32
    return %c0_i32, %c0_i32_0 : i32, i32
  }
  func.func @transform_2(%arg0: i32, %arg1: i32) -> (i32, i32) {
    %c0_i32 = arith.constant 0 : i32
    %c0_i32_0 = arith.constant 0 : i32
    %c0_i32_1 = arith.constant 0 : i32
    return %c0_i32, %c0_i32_0 : i32, i32
  }
  func.func @transform_3(%arg0: i32, %arg1: i32) -> (i32, i32, i32) {
    %c0_i32 = arith.constant 0 : i32
    %c0_i32_0 = arith.constant 0 : i32
    %c0_i32_1 = arith.constant 0 : i32
    return %arg0, %c0_i32, %c0_i32_0 : i32, i32, i32
  }
}

</mosaic_0001>

<llo_original>
// kernel: tpu_custom_call.1
$region0: #{tpu_custom_call.1}
  #allocation0 [shape = 'u32[]', space=smem, size = 0x4, offset = 0x4, fixed_abs, tag = 'smem constant byte address 0x4 - core index']
  #allocation1 [shape = 'u32[144,128]{1,0:T(1,128)}', space=vmem, size = 0x12000, scoped, tag = 'internal scratch']
  %s0 = inlined_call_operand.vmem [shape: bf16[2,240,32], index: 0, kind: input, shape index: {}]
  %s1 = inlined_call_operand.vmem [shape: bf16[32,256], index: 1, kind: input, shape index: {}]
  %s2 = inlined_call_operand.vmem [shape: f32[1,256], index: 2, kind: input, shape index: {}]
  %s3 = inlined_call_operand.hbm [shape: f32[2,1,256], index: 3, kind: output, shape index: {}]
  %s4 = sld [smem:[#allocation0]]
  $region53: #{tpu_custom_call.1} parent=0
    _
  %s6 = ssub.s32 1, %s4
  %s7 = scalar_select 0, %s6, %s4
  $region1: #{tpu_custom_call.1} parent=0
    #allocation2 [shape = 'u8[2048]{0}', space=vmem, size = 0x800, scoped, tag = 'output window, operand 0']
    #allocation3 [shape = 's32[2]{0}', space=sflag, size = 0x8, scoped, tag = 'scoped memory for tpu_custom_call.1']
    %8 = vsyncpa [#allocation3], 0
    %s9 = scalar_lea.sflag [#allocation3], 1
    %10 = vsyncpa %s9, 0
    loop: start=0, step=1, limit=4
    $region2: #{tpu_custom_call.1} parent=1 // loop_pre_header
      _
    $region3: #{tpu_custom_call.1} parent=1 // loop_header
      %s12 = sphi 0, %s16
      %p13 = scmp.ge.s32.totalorder %s12, 4
      %s19 = sphi 0, %s31
      %s20 = sphi 0, %s27
      %s21 = sphi 0, %s19
      %s22 = sphi 0, %s20
      %s23 = sphi 0, %s21
      %s24 = sphi 0, %s22
      %s36 = sphi 0, %s38
      %s39 = sphi 0, %s36
      %s40 = sphi 0, %s39
      %s56 = sphi 0, %s40
      %s60 = sphi 0, %s60
      %s62 = sphi 0, %s60
      %s63 = sphi 0, %s62
      %s77 = sphi 0, %s63
      %s81 = sphi 0, %s81
      %s83 = sphi 0, %s81
      %s84 = sphi 0, %s83
      %s98 = sphi 0, %s84
      %s104 = sphi 0, %s106
      %s107 = sphi 0, %s104
      %s108 = sphi 0, %s107
      %s124 = sphi 0, %s108
    $region4: #{tpu_custom_call.1} parent=1 // loop_header_branch
      %15 = sbr.rel (%p13) target = $region8
    $region5: #{tpu_custom_call.1} parent=1 // loop_body
      %s17 = ssub.s32 %s12, 1
      %s18 = ssub.s32 %s12, 2
      %s25 = sadd.s32 1, %s20
      %p26 = scmp.ge.s32.totalorder %s25, 1
      %s27 = scalar_select %p26, 0, %s25
      %s28 = sadd.s32 1, %s19
      %s29 = scalar_select %p26, %s28, %s19
      %p30 = scmp.ge.s32.totalorder %s29, 2
      %s31 = scalar_select %p30, 0, %s29
      %s32 = ssub.s32 %s19, %s31
      %s33 = ssub.s32 %s20, %s27
      %s34 = sor.u32 %s32, %s33
      %p35 = scmp.eq.s32.totalorder %s34, 0
      %s37 = sadd.s32 %s36, 1
      %s38 = scalar_select %p35, %s36, %s37
      %p41 = pneg %p35
      %p42 = scmp.eq.s32.totalorder %s12, 1
      %p43 = por %p41, %p42
      %p44 = scmp.ne.s32.totalorder %s36, %s39
      %p45 = scmp.eq.s32.totalorder %s12, 0
      %p46 = por %p44, %p45
      %p47 = scmp.ne.s32.totalorder %s36, %s39
      %p48 = scmp.eq.s32.totalorder %s17, 1
      %p49 = por %p47, %p48
      %p50 = scmp.ne.s32.totalorder %s39, %s40
      %p51 = scmp.eq.s32.totalorder %s17, 0
      %p52 = por %p50, %p51
      %p53 = scmp.ne.s32.totalorder %s39, %s40
      %p54 = scmp.eq.s32.totalorder %s18, 1
      %p55 = por %p53, %p54
      %p57 = scmp.ne.s32.totalorder %s40, %s56
      %p58 = scmp.eq.s32.totalorder %s18, 0
      %p59 = por %p57, %p58
      %s61 = sadd.s32 %s60, 1
      %p64 = scmp.eq.s32.totalorder %s12, 1
      %p65 = scmp.ne.s32.totalorder %s60, %s62
      %p66 = scmp.eq.s32.totalorder %s12, 0
      %p67 = por %p65, %p66
      %p68 = scmp.ne.s32.totalorder %s60, %s62
      %p69 = scmp.eq.s32.totalorder %s17, 1
      %p70 = por %p68, %p69
      %p71 = scmp.ne.s32.totalorder %s62, %s63
      %p72 = scmp.eq.s32.totalorder %s17, 0
      %p73 = por %p71, %p72
      %p74 = scmp.ne.s32.totalorder %s62, %s63
      %p75 = scmp.eq.s32.totalorder %s18, 1
      %p76 = por %p74, %p75
      %p78 = scmp.ne.s32.totalorder %s63, %s77
      %p79 = scmp.eq.s32.totalorder %s18, 0
      %p80 = por %p78, %p79
      %s82 = sadd.s32 %s81, 1
      %p85 = scmp.eq.s32.totalorder %s12, 1
      %p86 = scmp.ne.s32.totalorder %s81, %s83
      %p87 = scmp.eq.s32.totalorder %s12, 0
      %p88 = por %p86, %p87
      %p89 = scmp.ne.s32.totalorder %s81, %s83
      %p90 = scmp.eq.s32.totalorder %s17, 1
      %p91 = por %p89, %p90
      %p92 = scmp.ne.s32.totalorder %s83, %s84
      %p93 = scmp.eq.s32.totalorder %s17, 0
      %p94 = por %p92, %p93
      %p95 = scmp.ne.s32.totalorder %s83, %s84
      %p96 = scmp.eq.s32.totalorder %s18, 1
      %p97 = por %p95, %p96
      %p99 = scmp.ne.s32.totalorder %s84, %s98
      %p100 = scmp.eq.s32.totalorder %s18, 0
      %p101 = por %p99, %p100
      %s102 = ssub.s32 %s19, %s31
      %p103 = scmp.eq.s32.totalorder %s102, 0
      %s105 = sadd.s32 %s104, 1
      %s106 = scalar_select %p103, %s104, %s105
      %p109 = pneg %p103
      %p110 = scmp.eq.s32.totalorder %s12, 1
      %p111 = por %p109, %p110
      %p112 = scmp.ne.s32.totalorder %s104, %s107
      %p113 = scmp.eq.s32.totalorder %s12, 0
      %p114 = por %p112, %p113
      %p115 = scmp.ne.s32.totalorder %s104, %s107
      %p116 = scmp.eq.s32.totalorder %s17, 1
      %p117 = por %p115, %p116
      %p118 = scmp.ne.s32.totalorder %s107, %s108
      %p119 = scmp.eq.s32.totalorder %s17, 0
      %p120 = por %p118, %p119
      %p121 = scmp.ne.s32.totalorder %s107, %s108
      %p122 = scmp.eq.s32.totalorder %s18, 1
      %p123 = por %p121, %p122
      %p125 = scmp.ne.s32.totalorder %s108, %s124
      %p126 = scmp.eq.s32.totalorder %s18, 0
      %p127 = por %p125, %p126
      %p128 = scmp.le.s32.totalorder 1, %s12
      %p129 = scmp.lt.s32.totalorder %s12, 3
      %p130 = pnand %p128, %p129
      %p131 = pneg %p130
      // Predicated region
      $region9: #{tpu_custom_call.1} parent=5 // pred_check
        _
      $region10: #{tpu_custom_call.1} parent=5 // pred_check_branch
        %133 = sbr.rel (%p130) target = $region12
      $region11: #{tpu_custom_call.1} parent=5 // pred_region
        %s134 = ssub.s32 %s12, 1
        // Predicated region
        $region13: #{tpu_custom_call.1} parent=11 // pred_check
          %p135 = pneg %p73
        $region14: #{tpu_custom_call.1} parent=11 // pred_check_branch
          %137 = sbr.rel (%p135) target = $region16
        $region15: #{tpu_custom_call.1} parent=11 // pred_region
          _
        $region16: #{tpu_custom_call.1} parent=11 // pred_fallthru
          _
        // Predicated region
        $region17: #{tpu_custom_call.1} parent=11 // pred_check
          %p138 = pneg %p94
        $region18: #{tpu_custom_call.1} parent=11 // pred_check_branch
          %140 = sbr.rel (%p138) target = $region20
        $region19: #{tpu_custom_call.1} parent=11 // pred_region
          _
        $region20: #{tpu_custom_call.1} parent=11 // pred_fallthru
          _
      $region12: #{tpu_custom_call.1} parent=5 // pred_fallthru
        _
      %p141 = scmp.lt.s32.totalorder %s12, 2
      // Predicated region
      $region21: #{tpu_custom_call.1} parent=5 // pred_check
        %p142 = pneg %p141
      $region22: #{tpu_custom_call.1} parent=5 // pred_check_branch
        %144 = sbr.rel (%p142) target = $region24
      $region23: #{tpu_custom_call.1} parent=5 // pred_region
        // Predicated region
        $region25: #{tpu_custom_call.1} parent=23 // pred_check
          %p145 = pneg %p46
        $region26: #{tpu_custom_call.1} parent=23 // pred_check_branch
          %147 = sbr.rel (%p145) target = $region28
        $region27: #{tpu_custom_call.1} parent=23 // pred_region
          %s148 = smul.u32 30, %s20
          %p149 = scmp.lt.s32.totalorder %s19, 1
          %s150 = scalar_select %p149, %s19, 1
          %p151 = scmp.lt.s32.totalorder %s148, 29
          %s152 = scalar_select %p151, %s148, 29
          %s153 = smul.addr %s150, 30
          %s154 = sadd.s32 %s152, %s153
          %s155 = smul.addr %s154, 4
          %s156 = scalar_lea.vmem %s0, %s155
          %s157 = smul.u32 30, %s20
        $region28: #{tpu_custom_call.1} parent=23 // pred_fallthru
          _
      $region24: #{tpu_custom_call.1} parent=5 // pred_fallthru
        _
      %p158 = scmp.le.s32.totalorder 1, %s12
      %p159 = scmp.lt.s32.totalorder %s12, 3
      %p160 = pnand %p158, %p159
      %p161 = pneg %p160
      // Predicated region
      $region29: #{tpu_custom_call.1} parent=5 // pred_check
        _
      $region30: #{tpu_custom_call.1} parent=5 // pred_check_branch
        %163 = sbr.rel (%p160) target = $region32
      $region31: #{tpu_custom_call.1} parent=5 // pred_region
        %s164 = ssub.s32 %s12, 1
        %s165 = smul.u32 30, %s22
        %p166 = scmp.lt.s32.totalorder %s21, 1
        %s167 = scalar_select %p166, %s21, 1
        %p168 = scmp.lt.s32.totalorder %s165, 29
        %s169 = scalar_select %p168, %s165, 29
        %s170 = smul.addr %s167, 30
        %s171 = sadd.s32 %s169, %s170
        %s172 = smul.addr %s171, 4
        %s173 = scalar_lea.vmem %s0, %s172
        %p174 = pneg %p52
        %p175 = pneg %p49
        %p176 = pneg %p73
        %p177 = pneg %p70
        %p178 = pneg %p94
        %p179 = pneg %p91
        %p180 = pneg %p120
        %p181 = pneg %p117
        %s182 = sand.u32 %s107, 1
        %s183 = scalar_lea.sflag [#allocation3], %s182
        %s184 = sand.u32 %s107, 1
        %s185 = smul.addr %s184, 2
        %s186 = scalar_lea.vmem [#allocation2], %s185
        %s187 = smul.u32 30, %s22
        %p188 = scmp.lt.s32.totalorder %s21, 1
        %s189 = scalar_select %p188, %s21, 1
        %p190 = scmp.lt.s32.totalorder %s187, 29
        %s191 = scalar_select %p190, %s187, 29
        %s192 = smul.addr %s189, 30
        %s193 = sadd.s32 %s191, %s192
        %s194 = smul.addr %s193, 4
        %s195 = scalar_lea.vmem %s0, %s194
        %s196 = smul.u32 30, %s22
        %p198 = scmp.eq.s32.totalorder %s22, 0
        // Predicated region
        $region33: #{tpu_custom_call.1} parent=31 // pred_check
          %p199 = pneg %p198
        $region34: #{tpu_custom_call.1} parent=31 // pred_check_branch
          %201 = sbr.rel (%p199) target = $region36
        $region35: #{tpu_custom_call.1} parent=31 // pred_region
          %v202 = vlaneseq
          %vm203 = vcmp.ge.s32.totalorder %v202, 0
          %vm204 = vcmp.lt.s32.totalorder %v202, 256
          %vm205 = vmand %vm203, %vm204
          %206 = vst.msk [vmem:[%s186] sm:$0x3] %vm205, 0.0
        $region36: #{tpu_custom_call.1} parent=31 // pred_fallthru
          _
        %v207 = vld [vmem:[%s195] sm:$0xf]
        %v208 = vld [vmem:[%s195 + $0x4] sm:$0xf]
        %v209 = vld [vmem:[%s195 + $0x8] sm:$0xf]
        %v210 = vld [vmem:[%s195 + $0xc] sm:$0xf]
        %v211 = vld [vmem:[%s195 + $0x10] sm:$0xf]
        %v212 = vld [vmem:[%s195 + $0x14] sm:$0xf]
        %v213 = vld [vmem:[%s195 + $0x18] sm:$0xf]
        %v214 = vld [vmem:[%s195 + $0x1c] sm:$0xf]
        %v215 = vld [vmem:[%s195 + $0x20] sm:$0xf]
        %v216 = vld [vmem:[%s195 + $0x24] sm:$0xf]
        %v217 = vld [vmem:[%s195 + $0x28] sm:$0xf]
        %v218 = vld [vmem:[%s195 + $0x2c] sm:$0xf]
        %v219 = vld [vmem:[%s195 + $0x30] sm:$0xf]
        %v220 = vld [vmem:[%s195 + $0x34] sm:$0xf]
        %v221 = vld [vmem:[%s195 + $0x38] sm:$0xf]
        %v222 = vld [vmem:[%s195 + $0x3c] sm:$0xf]
        %v223 = vld [vmem:[%s195 + $0x40] sm:$0xf]
        %v224 = vld [vmem:[%s195 + $0x44] sm:$0xf]
        %v225 = vld [vmem:[%s195 + $0x48] sm:$0xf]
        %v226 = vld [vmem:[%s195 + $0x4c] sm:$0xf]
        %v227 = vld [vmem:[%s195 + $0x50] sm:$0xf]
        %v228 = vld [vmem:[%s195 + $0x54] sm:$0xf]
        %v229 = vld [vmem:[%s195 + $0x58] sm:$0xf]
        %v230 = vld [vmem:[%s195 + $0x5c] sm:$0xf]
        %v231 = vld [vmem:[%s195 + $0x60] sm:$0xf]
        %v232 = vld [vmem:[%s195 + $0x64] sm:$0xf]
        %v233 = vld [vmem:[%s195 + $0x68] sm:$0xf]
        %v234 = vld [vmem:[%s195 + $0x6c] sm:$0xf]
        %v235 = vld [vmem:[%s195 + $0x70] sm:$0xf]
        %v236 = vld [vmem:[%s195 + $0x74] sm:$0xf]
        %v237 = vld [vmem:[%s1] sm:$0xff]
        %v238 = vld [vmem:[%s1 + $0x8] sm:$0xff]
        %v239 = vld [vmem:[%s1 + $0x10] sm:$0xff]
        %v240 = vld [vmem:[%s1 + $0x18] sm:$0xff]
        %v241 = vld [vmem:[%s2] sm:$0x3]
        %v243 = vlaneseq
        %v244 = vshrl.u32 %v243, 7
        %v245 = vsub.s32 0, %v244
        %v246 = vrot.slane %v241, %v245
        %v247 = vlaneseq
        %v248 = vshrl.u32 %v247, 7
        %v249 = vsub.s32 1, %v248
        %v250 = vrot.slane %v241, %v249
        %v283 = vunpack.c.l.b16 %v207
        %v284 = vunpack.c.l.b16 %v208
        %v285 = vunpack.c.l.b16 %v209
        %v286 = vunpack.c.l.b16 %v210
        %v287 = vunpack.c.l.b16 %v211
        %v288 = vunpack.c.l.b16 %v212
        %v289 = vunpack.c.l.b16 %v213
        %v290 = vunpack.c.l.b16 %v214
        %v291 = vunpack.c.l.b16 %v215
        %v292 = vunpack.c.l.b16 %v216
        %v293 = vunpack.c.l.b16 %v217
        %v294 = vunpack.c.l.b16 %v218
        %v295 = vunpack.c.l.b16 %v219
        %v296 = vunpack.c.l.b16 %v220
        %v297 = vunpack.c.l.b16 %v221
        %v298 = vunpack.c.l.b16 %v222
        %v299 = vunpack.c.l.b16 %v223
        %v300 = vunpack.c.l.b16 %v224
        %v301 = vunpack.c.l.b16 %v225
        %v302 = vunpack.c.l.b16 %v226
        %v303 = vunpack.c.l.b16 %v227
        %v304 = vunpack.c.l.b16 %v228
        %v305 = vunpack.c.l.b16 %v229
        %v306 = vunpack.c.l.b16 %v230
        %v307 = vunpack.c.l.b16 %v231
        %v308 = vunpack.c.l.b16 %v232
        %v309 = vunpack.c.l.b16 %v233
        %v310 = vunpack.c.l.b16 %v234
        %v311 = vunpack.c.l.b16 %v235
        %v312 = vunpack.c.l.b16 %v236
        %v313 = vpack.c.b16 %v284, %v283
        %v314 = vpack.c.b16 %v286, %v285
        %v315 = vpack.c.b16 %v288, %v287
        %v316 = vpack.c.b16 %v290, %v289
        %v317 = vpack.c.b16 %v292, %v291
        %v318 = vpack.c.b16 %v294, %v293
        %v319 = vpack.c.b16 %v296, %v295
        %v320 = vpack.c.b16 %v298, %v297
        %v321 = vpack.c.b16 %v300, %v299
        %v322 = vpack.c.b16 %v302, %v301
        %v323 = vpack.c.b16 %v304, %v303
        %v324 = vpack.c.b16 %v306, %v305
        %v325 = vpack.c.b16 %v308, %v307
        %v326 = vpack.c.b16 %v310, %v309
        %v327 = vpack.c.b16 %v312, %v311
        %v332 = vunpack.c.l.b16 %v237
        %v333 = vunpack.c.h.b16 %v237
        %v334 = vunpack.c.l.b16 %v238
        %v335 = vunpack.c.h.b16 %v238
        %v336 = vunpack.c.l.b16 %v239
        %v337 = vunpack.c.h.b16 %v239
        %v338 = vunpack.c.l.b16 %v240
        %v339 = vunpack.c.h.b16 %v240
        %v340 = vpack.c.b16 %v334, %v332
        %v341 = vpack.c.b16 %v335, %v333
        %v342 = vpack.c.b16 %v338, %v336
        %v343 = vpack.c.b16 %v339, %v337
        %vm348 = vcmask 261120
        %v350 = vsel %vm348, %v313, 0
        %v353 = vsel %vm348, %v314, 0
        %v356 = vsel %vm348, %v315, 0
        %v359 = vsel %vm348, %v316, 0
        %v362 = vsel %vm348, %v317, 0
        %v365 = vsel %vm348, %v318, 0
        %v368 = vsel %vm348, %v319, 0
        %v371 = vsel %vm348, %v320, 0
        %v374 = vsel %vm348, %v321, 0
        %v377 = vsel %vm348, %v322, 0
        %v380 = vsel %vm348, %v323, 0
        %v383 = vsel %vm348, %v324, 0
        %v386 = vsel %vm348, %v325, 0
        %v389 = vsel %vm348, %v326, 0
        %v392 = vsel %vm348, %v327, 0
        %394 = vmatprep.subr.bf16.mxu0 0
        %395 = vmatpush1.bf16.msra.mxu0 0
        %396 = vmatprep.subr.bf16.mxu0 0
        %397 = vmatpush1.bf16.msra.mxu0 0
        %398 = vmatprep.subr.bf16.mxu0 0
        %399 = vmatpush1.bf16.msra.mxu0 0
        %400 = vmatprep.subr.bf16.mxu0 0
        %401 = vmatpush1.bf16.msra.mxu0 0
        %402 = vmatprep.subr.bf16.mxu0 0
        %403 = vmatpush1.bf16.msra.mxu0 0
        %404 = vmatprep.subr.bf16.mxu0 0
        %405 = vmatpush1.bf16.msra.mxu0 0
        %406 = vmatprep.subr.bf16.mxu0 %v343
        %407 = vmatpush1.bf16.msra.mxu0 %v342
        %408 = vmatprep.subr.bf16.mxu0 %v341
        %409 = vmatpush1.bf16.msra.mxu0 %v340
        %410 = vmatprep.subr.bf16.mxu0 0
        %411 = vmatpush2.bf16.msra.mxu0 0
        %412 = vmatprep.subr.bf16.mxu0 0
        %413 = vmatpush2.bf16.msra.mxu0 0
        %414 = vmatprep.subr.bf16.mxu0 0
        %415 = vmatpush2.bf16.msra.mxu0 0
        %416 = vmatprep.subr.bf16.mxu0 0
        %417 = vmatpush2.bf16.msra.mxu0 0
        %418 = vmatprep.subr.bf16.mxu0 0
        %419 = vmatpush2.bf16.msra.mxu0 0
        %420 = vmatprep.subr.bf16.mxu0 0
        %421 = vmatpush2.bf16.msra.mxu0 0
        %422 = vmatprep.subr.bf16.mxu0 0
        %423 = vmatpush2.bf16.msra.mxu0 0
        %424 = vmatprep.subr.bf16.mxu0 0
        %425 = vmatpush2.bf16.msra.mxu0 0
        %426 = vmatprep.mubr.bf16.mxu0 0
        %427 = vmatmul.mubr.bf16.gmra.mxu0 %v350
        %v428 = vpop.f32.mrf.mxu0
        %v429 = vadd.f32 %v246, %v428
        %v430 = vpop.f32.mrf.mxu0
        %v431 = vadd.f32 %v250, %v430
        %v432 = vpop.f32.mrf.mxu0
        %v433 = vadd.f32 %v246, %v432
        %v434 = vpop.f32.mrf.mxu0
        %v435 = vadd.f32 %v250, %v434
        %436 = vmatprep.mubr.bf16.mxu0 0
        %437 = vmatmul.mubr.bf16.gmra.mxu0 %v353
        %v438 = vpop.f32.mrf.mxu0
        %v439 = vadd.f32 %v246, %v438
        %v440 = vpop.f32.mrf.mxu0
        %v441 = vadd.f32 %v250, %v440
        %v442 = vpop.f32.mrf.mxu0
        %v443 = vadd.f32 %v246, %v442
        %v444 = vpop.f32.mrf.mxu0
        %v445 = vadd.f32 %v250, %v444
        %446 = vmatprep.mubr.bf16.mxu0 0
        %447 = vmatmul.mubr.bf16.gmra.mxu0 %v356
        %v448 = vpop.f32.mrf.mxu0
        %v449 = vadd.f32 %v246, %v448
        %v450 = vpop.f32.mrf.mxu0
        %v451 = vadd.f32 %v250, %v450
        %v452 = vpop.f32.mrf.mxu0
        %v453 = vadd.f32 %v246, %v452
        %v454 = vpop.f32.mrf.mxu0
        %v455 = vadd.f32 %v250, %v454
        %456 = vmatprep.mubr.bf16.mxu0 0
        %457 = vmatmul.mubr.bf16.gmra.mxu0 %v359
        %v458 = vpop.f32.mrf.mxu0
        %v459 = vadd.f32 %v246, %v458
        %v460 = vpop.f32.mrf.mxu0
        %v461 = vadd.f32 %v250, %v460
        %v462 = vpop.f32.mrf.mxu0
        %v463 = vadd.f32 %v246, %v462
        %v464 = vpop.f32.mrf.mxu0
        %v465 = vadd.f32 %v250, %v464
        %466 = vmatprep.mubr.bf16.mxu0 0
        %467 = vmatmul.mubr.bf16.gmra.mxu0 %v362
        %v468 = vpop.f32.mrf.mxu0
        %v469 = vadd.f32 %v246, %v468
        %v470 = vpop.f32.mrf.mxu0
        %v471 = vadd.f32 %v250, %v470
        %v472 = vpop.f32.mrf.mxu0
        %v473 = vadd.f32 %v246, %v472
        %v474 = vpop.f32.mrf.mxu0
        %v475 = vadd.f32 %v250, %v474
        %476 = vmatprep.mubr.bf16.mxu0 0
        %477 = vmatmul.mubr.bf16.gmra.mxu0 %v365
        %v478 = vpop.f32.mrf.mxu0
        %v479 = vadd.f32 %v246, %v478
        %v480 = vpop.f32.mrf.mxu0
        %v481 = vadd.f32 %v250, %v480
        %v482 = vpop.f32.mrf.mxu0
        %v483 = vadd.f32 %v246, %v482
        %v484 = vpop.f32.mrf.mxu0
        %v485 = vadd.f32 %v250, %v484
        %486 = vmatprep.mubr.bf16.mxu0 0
        %487 = vmatmul.mubr.bf16.gmra.mxu0 %v368
        %v488 = vpop.f32.mrf.mxu0
        %v489 = vadd.f32 %v246, %v488
        %v490 = vpop.f32.mrf.mxu0
        %v491 = vadd.f32 %v250, %v490
        %v492 = vpop.f32.mrf.mxu0
        %v493 = vadd.f32 %v246, %v492
        %v494 = vpop.f32.mrf.mxu0
        %v495 = vadd.f32 %v250, %v494
        %496 = vmatprep.mubr.bf16.mxu0 0
        %497 = vmatmul.mubr.bf16.gmra.mxu0 %v371
        %v498 = vpop.f32.mrf.mxu0
        %v499 = vadd.f32 %v246, %v498
        %v500 = vpop.f32.mrf.mxu0
        %v501 = vadd.f32 %v250, %v500
        %v502 = vpop.f32.mrf.mxu0
        %v503 = vadd.f32 %v246, %v502
        %v504 = vpop.f32.mrf.mxu0
        %v505 = vadd.f32 %v250, %v504
        %506 = vmatprep.mubr.bf16.mxu0 0
        %507 = vmatmul.mubr.bf16.gmra.mxu0 %v374
        %v508 = vpop.f32.mrf.mxu0
        %v509 = vadd.f32 %v246, %v508
        %v510 = vpop.f32.mrf.mxu0
        %v511 = vadd.f32 %v250, %v510
        %v512 = vpop.f32.mrf.mxu0
        %v513 = vadd.f32 %v246, %v512
        %v514 = vpop.f32.mrf.mxu0
        %v515 = vadd.f32 %v250, %v514
        %516 = vmatprep.mubr.bf16.mxu0 0
        %517 = vmatmul.mubr.bf16.gmra.mxu0 %v377
        %v518 = vpop.f32.mrf.mxu0
        %v519 = vadd.f32 %v246, %v518
        %v520 = vpop.f32.mrf.mxu0
        %v521 = vadd.f32 %v250, %v520
        %v522 = vpop.f32.mrf.mxu0
        %v523 = vadd.f32 %v246, %v522
        %v524 = vpop.f32.mrf.mxu0
        %v525 = vadd.f32 %v250, %v524
        %526 = vmatprep.mubr.bf16.mxu0 0
        %527 = vmatmul.mubr.bf16.gmra.mxu0 %v380
        %v528 = vpop.f32.mrf.mxu0
        %v529 = vadd.f32 %v246, %v528
        %v530 = vpop.f32.mrf.mxu0
        %v531 = vadd.f32 %v250, %v530
        %v532 = vpop.f32.mrf.mxu0
        %v533 = vadd.f32 %v246, %v532
        %v534 = vpop.f32.mrf.mxu0
        %v535 = vadd.f32 %v250, %v534
        %536 = vmatprep.mubr.bf16.mxu0 0
        %537 = vmatmul.mubr.bf16.gmra.mxu0 %v383
        %v538 = vpop.f32.mrf.mxu0
        %v539 = vadd.f32 %v246, %v538
        %v540 = vpop.f32.mrf.mxu0
        %v541 = vadd.f32 %v250, %v540
        %v542 = vpop.f32.mrf.mxu0
        %v543 = vadd.f32 %v246, %v542
        %v544 = vpop.f32.mrf.mxu0
        %v545 = vadd.f32 %v250, %v544
        %546 = vmatprep.mubr.bf16.mxu0 0
        %547 = vmatmul.mubr.bf16.gmra.mxu0 %v386
        %v548 = vpop.f32.mrf.mxu0
        %v549 = vadd.f32 %v246, %v548
        %v550 = vpop.f32.mrf.mxu0
        %v551 = vadd.f32 %v250, %v550
        %v552 = vpop.f32.mrf.mxu0
        %v553 = vadd.f32 %v246, %v552
        %v554 = vpop.f32.mrf.mxu0
        %v555 = vadd.f32 %v250, %v554
        %556 = vmatprep.mubr.bf16.mxu0 0
        %557 = vmatmul.mubr.bf16.gmra.mxu0 %v389
        %v558 = vpop.f32.mrf.mxu0
        %v559 = vadd.f32 %v246, %v558
        %v560 = vpop.f32.mrf.mxu0
        %v561 = vadd.f32 %v250, %v560
        %v562 = vpop.f32.mrf.mxu0
        %v563 = vadd.f32 %v246, %v562
        %v564 = vpop.f32.mrf.mxu0
        %v565 = vadd.f32 %v250, %v564
        %566 = vmatprep.mubr.bf16.mxu0 0
        %567 = vmatmul.mubr.bf16.gmra.mxu0 %v392
        %v568 = vpop.f32.mrf.mxu0
        %v569 = vadd.f32 %v246, %v568
        %v570 = vpop.f32.mrf.mxu0
        %v571 = vadd.f32 %v250, %v570
        %v572 = vpop.f32.mrf.mxu0
        %v573 = vadd.f32 %v246, %v572
        %v574 = vpop.f32.mrf.mxu0
        %v575 = vadd.f32 %v250, %v574
        %576 = vdwg.mxu0
        %v577 = vmax.f32 %v429, 0.0
        %v578 = vmax.f32 %v431, 0.0
        %v579 = vmax.f32 %v433, 0.0
        %v580 = vmax.f32 %v435, 0.0
        %v581 = vmax.f32 %v439, 0.0
        %v582 = vmax.f32 %v441, 0.0
        %v583 = vmax.f32 %v443, 0.0
        %v584 = vmax.f32 %v445, 0.0
        %v585 = vmax.f32 %v449, 0.0
        %v586 = vmax.f32 %v451, 0.0
        %v587 = vmax.f32 %v453, 0.0
        %v588 = vmax.f32 %v455, 0.0
        %v589 = vmax.f32 %v459, 0.0
        %v590 = vmax.f32 %v461, 0.0
        %v591 = vmax.f32 %v463, 0.0
        %v592 = vmax.f32 %v465, 0.0
        %v593 = vmax.f32 %v469, 0.0
        %v594 = vmax.f32 %v471, 0.0
        %v595 = vmax.f32 %v473, 0.0
        %v596 = vmax.f32 %v475, 0.0
        %v597 = vmax.f32 %v479, 0.0
        %v598 = vmax.f32 %v481, 0.0
        %v599 = vmax.f32 %v483, 0.0
        %v600 = vmax.f32 %v485, 0.0
        %v601 = vmax.f32 %v489, 0.0
        %v602 = vmax.f32 %v491, 0.0
        %v603 = vmax.f32 %v493, 0.0
        %v604 = vmax.f32 %v495, 0.0
        %v605 = vmax.f32 %v499, 0.0
        %v606 = vmax.f32 %v501, 0.0
        %v607 = vmax.f32 %v503, 0.0
        %v608 = vmax.f32 %v505, 0.0
        %v609 = vmax.f32 %v509, 0.0
        %v610 = vmax.f32 %v511, 0.0
        %v611 = vmax.f32 %v513, 0.0
        %v612 = vmax.f32 %v515, 0.0
        %v613 = vmax.f32 %v519, 0.0
        %v614 = vmax.f32 %v521, 0.0
        %v615 = vmax.f32 %v523, 0.0
        %v616 = vmax.f32 %v525, 0.0
        %v617 = vmax.f32 %v529, 0.0
        %v618 = vmax.f32 %v531, 0.0
        %v619 = vmax.f32 %v533, 0.0
        %v620 = vmax.f32 %v535, 0.0
        %v621 = vmax.f32 %v539, 0.0
        %v622 = vmax.f32 %v541, 0.0
        %v623 = vmax.f32 %v543, 0.0
        %v624 = vmax.f32 %v545, 0.0
        %v625 = vmax.f32 %v549, 0.0
        %v626 = vmax.f32 %v551, 0.0
        %v627 = vmax.f32 %v553, 0.0
        %v628 = vmax.f32 %v555, 0.0
        %v629 = vmax.f32 %v559, 0.0
        %v630 = vmax.f32 %v561, 0.0
        %v631 = vmax.f32 %v563, 0.0
        %v632 = vmax.f32 %v565, 0.0
        %v633 = vmax.f32 %v569, 0.0
        %v634 = vmax.f32 %v571, 0.0
        %v635 = vmax.f32 %v573, 0.0
        %v636 = vmax.f32 %v575, 0.0
        %s637 = smul.u32 %s22, 240
        %v638 = vlaneseq
        %v639 = vshrl.u32 %v638, 7
        %v640 = vadd.s32 %v639, 8
        %v641 = vadd.s32 %v639, 16
        %v642 = vadd.s32 %v639, 24
        %v643 = vadd.s32 %v639, 32
        %v644 = vadd.s32 %v639, 40
        %v645 = vadd.s32 %v639, 48
        %v646 = vadd.s32 %v639, 56
        %v647 = vadd.s32 %v639, 64
        %v648 = vadd.s32 %v639, 72
        %v649 = vadd.s32 %v639, 80
        %v650 = vadd.s32 %v639, 88
        %v651 = vadd.s32 %v639, 96
        %v652 = vadd.s32 %v639, 104
        %v653 = vadd.s32 %v639, 112
        %v654 = vadd.s32 %v639, 120
        %v655 = vadd.s32 %v639, 128
        %v656 = vadd.s32 %v639, 136
        %v657 = vadd.s32 %v639, 144
        %v658 = vadd.s32 %v639, 152
        %v659 = vadd.s32 %v639, 160
        %v660 = vadd.s32 %v639, 168
        %v661 = vadd.s32 %v639, 176
        %v662 = vadd.s32 %v639, 184
        %v663 = vadd.s32 %v639, 192
        %v664 = vadd.s32 %v639, 200
        %v665 = vadd.s32 %v639, 208
        %v666 = vadd.s32 %v639, 216
        %v667 = vadd.s32 %v639, 224
        %v668 = vadd.s32 %v639, 232
        %v669 = vstv %s637
        %v670 = vadd.s32 %v669, %v639
        %v671 = vadd.s32 %v669, %v640
        %v672 = vadd.s32 %v669, %v641
        %v673 = vadd.s32 %v669, %v642
        %v674 = vadd.s32 %v669, %v643
        %v675 = vadd.s32 %v669, %v644
        %v676 = vadd.s32 %v669, %v645
        %v677 = vadd.s32 %v669, %v646
        %v678 = vadd.s32 %v669, %v647
        %v679 = vadd.s32 %v669, %v648
        %v680 = vadd.s32 %v669, %v649
        %v681 = vadd.s32 %v669, %v650
        %v682 = vadd.s32 %v669, %v651
        %v683 = vadd.s32 %v669, %v652
        %v684 = vadd.s32 %v669, %v653
        %v685 = vadd.s32 %v669, %v654
        %v686 = vadd.s32 %v669, %v655
        %v687 = vadd.s32 %v669, %v656
        %v688 = vadd.s32 %v669, %v657
        %v689 = vadd.s32 %v669, %v658
        %v690 = vadd.s32 %v669, %v659
        %v691 = vadd.s32 %v669, %v660
        %v692 = vadd.s32 %v669, %v661
        %v693 = vadd.s32 %v669, %v662
        %v694 = vadd.s32 %v669, %v663
        %v695 = vadd.s32 %v669, %v664
        %v696 = vadd.s32 %v669, %v665
        %v697 = vadd.s32 %v669, %v666
        %v698 = vadd.s32 %v669, %v667
        %v699 = vadd.s32 %v669, %v668
        %vm700 = vcmp.lt.s32.totalorder %v670, 225
        %vm701 = vcmp.lt.s32.totalorder %v671, 225
        %vm702 = vcmp.lt.s32.totalorder %v672, 225
        %vm703 = vcmp.lt.s32.totalorder %v673, 225
        %vm704 = vcmp.lt.s32.totalorder %v674, 225
        %vm705 = vcmp.lt.s32.totalorder %v675, 225
        %vm706 = vcmp.lt.s32.totalorder %v676, 225
        %vm707 = vcmp.lt.s32.totalorder %v677, 225
        %vm708 = vcmp.lt.s32.totalorder %v678, 225
        %vm709 = vcmp.lt.s32.totalorder %v679, 225
        %vm710 = vcmp.lt.s32.totalorder %v680, 225
        %vm711 = vcmp.lt.s32.totalorder %v681, 225
        %vm712 = vcmp.lt.s32.totalorder %v682, 225
        %vm713 = vcmp.lt.s32.totalorder %v683, 225
        %vm714 = vcmp.lt.s32.totalorder %v684, 225
        %vm715 = vcmp.lt.s32.totalorder %v685, 225
        %vm716 = vcmp.lt.s32.totalorder %v686, 225
        %vm717 = vcmp.lt.s32.totalorder %v687, 225
        %vm718 = vcmp.lt.s32.totalorder %v688, 225
        %vm719 = vcmp.lt.s32.totalorder %v689, 225
        %vm720 = vcmp.lt.s32.totalorder %v690, 225
        %vm721 = vcmp.lt.s32.totalorder %v691, 225
        %vm722 = vcmp.lt.s32.totalorder %v692, 225
        %vm723 = vcmp.lt.s32.totalorder %v693, 225
        %vm724 = vcmp.lt.s32.totalorder %v694, 225
        %vm725 = vcmp.lt.s32.totalorder %v695, 225
        %vm726 = vcmp.lt.s32.totalorder %v696, 225
        %vm727 = vcmp.lt.s32.totalorder %v697, 225
        %vm728 = vcmp.lt.s32.totalorder %v698, 225
        %vm729 = vcmp.lt.s32.totalorder %v699, 225
        %v730 = vsel %vm700, 1, 0
        %v731 = vsel %vm701, 1, 0
        %v732 = vsel %vm702, 1, 0
        %v733 = vsel %vm703, 1, 0
        %v734 = vsel %vm704, 1, 0
        %v735 = vsel %vm705, 1, 0
        %v736 = vsel %vm706, 1, 0
        %v737 = vsel %vm707, 1, 0
        %v738 = vsel %vm708, 1, 0
        %v739 = vsel %vm709, 1, 0
        %v740 = vsel %vm710, 1, 0
        %v741 = vsel %vm711, 1, 0
        %v742 = vsel %vm712, 1, 0
        %v743 = vsel %vm713, 1, 0
        %v744 = vsel %vm714, 1, 0
        %v745 = vsel %vm715, 1, 0
        %v746 = vsel %vm716, 1, 0
        %v747 = vsel %vm717, 1, 0
        %v748 = vsel %vm718, 1, 0
        %v749 = vsel %vm719, 1, 0
        %v750 = vsel %vm720, 1, 0
        %v751 = vsel %vm721, 1, 0
        %v752 = vsel %vm722, 1, 0
        %v753 = vsel %vm723, 1, 0
        %v754 = vsel %vm724, 1, 0
        %v755 = vsel %vm725, 1, 0
        %v756 = vsel %vm726, 1, 0
        %v757 = vsel %vm727, 1, 0
        %v758 = vsel %vm728, 1, 0
        %v759 = vsel %vm729, 1, 0
        %vm760 = vcmp.eq.s32.totalorder %v730, 1
        %vm761 = vcmp.eq.s32.totalorder %v731, 1
        %vm762 = vcmp.eq.s32.totalorder %v732, 1
        %vm763 = vcmp.eq.s32.totalorder %v733, 1
        %vm764 = vcmp.eq.s32.totalorder %v734, 1
        %vm765 = vcmp.eq.s32.totalorder %v735, 1
        %vm766 = vcmp.eq.s32.totalorder %v736, 1
        %vm767 = vcmp.eq.s32.totalorder %v737, 1
        %vm768 = vcmp.eq.s32.totalorder %v738, 1
        %vm769 = vcmp.eq.s32.totalorder %v739, 1
        %vm770 = vcmp.eq.s32.totalorder %v740, 1
        %vm771 = vcmp.eq.s32.totalorder %v741, 1
        %vm772 = vcmp.eq.s32.totalorder %v742, 1
        %vm773 = vcmp.eq.s32.totalorder %v743, 1
        %vm774 = vcmp.eq.s32.totalorder %v744, 1
        %vm775 = vcmp.eq.s32.totalorder %v745, 1
        %vm776 = vcmp.eq.s32.totalorder %v746, 1
        %vm777 = vcmp.eq.s32.totalorder %v747, 1
        %vm778 = vcmp.eq.s32.totalorder %v748, 1
        %vm779 = vcmp.eq.s32.totalorder %v749, 1
        %vm780 = vcmp.eq.s32.totalorder %v750, 1
        %vm781 = vcmp.eq.s32.totalorder %v751, 1
        %vm782 = vcmp.eq.s32.totalorder %v752, 1
        %vm783 = vcmp.eq.s32.totalorder %v753, 1
        %vm784 = vcmp.eq.s32.totalorder %v754, 1
        %vm785 = vcmp.eq.s32.totalorder %v755, 1
        %vm786 = vcmp.eq.s32.totalorder %v756, 1
        %vm787 = vcmp.eq.s32.totalorder %v757, 1
        %vm788 = vcmp.eq.s32.totalorder %v758, 1
        %vm789 = vcmp.eq.s32.totalorder %v759, 1
        %v790 = vsel %vm760, %v577, 0.0
        %v791 = vsel %vm760, %v578, 0.0
        %v792 = vsel %vm761, %v579, 0.0
        %v793 = vsel %vm761, %v580, 0.0
        %v794 = vsel %vm762, %v581, 0.0
        %v795 = vsel %vm762, %v582, 0.0
        %v796 = vsel %vm763, %v583, 0.0
        %v797 = vsel %vm763, %v584, 0.0
        %v798 = vsel %vm764, %v585, 0.0
        %v799 = vsel %vm764, %v586, 0.0
        %v800 = vsel %vm765, %v587, 0.0
        %v801 = vsel %vm765, %v588, 0.0
        %v802 = vsel %vm766, %v589, 0.0
        %v803 = vsel %vm766, %v590, 0.0
        %v804 = vsel %vm767, %v591, 0.0
        %v805 = vsel %vm767, %v592, 0.0
        %v806 = vsel %vm768, %v593, 0.0
        %v807 = vsel %vm768, %v594, 0.0
        %v808 = vsel %vm769, %v595, 0.0
        %v809 = vsel %vm769, %v596, 0.0
        %v810 = vsel %vm770, %v597, 0.0
        %v811 = vsel %vm770, %v598, 0.0
        %v812 = vsel %vm771, %v599, 0.0
        %v813 = vsel %vm771, %v600, 0.0
        %v814 = vsel %vm772, %v601, 0.0
        %v815 = vsel %vm772, %v602, 0.0
        %v816 = vsel %vm773, %v603, 0.0
        %v817 = vsel %vm773, %v604, 0.0
        %v818 = vsel %vm774, %v605, 0.0
        %v819 = vsel %vm774, %v606, 0.0
        %v820 = vsel %vm775, %v607, 0.0
        %v821 = vsel %vm775, %v608, 0.0
        %v822 = vsel %vm776, %v609, 0.0
        %v823 = vsel %vm776, %v610, 0.0
        %v824 = vsel %vm777, %v611, 0.0
        %v825 = vsel %vm777, %v612, 0.0
        %v826 = vsel %vm778, %v613, 0.0
        %v827 = vsel %vm778, %v614, 0.0
        %v828 = vsel %vm779, %v615, 0.0
        %v829 = vsel %vm779, %v616, 0.0
        %v830 = vsel %vm780, %v617, 0.0
        %v831 = vsel %vm780, %v618, 0.0
        %v832 = vsel %vm781, %v619, 0.0
        %v833 = vsel %vm781, %v620, 0.0
        %v834 = vsel %vm782, %v621, 0.0
        %v835 = vsel %vm782, %v622, 0.0
        %v836 = vsel %vm783, %v623, 0.0
        %v837 = vsel %vm783, %v624, 0.0
        %v838 = vsel %vm784, %v625, 0.0
        %v839 = vsel %vm784, %v626, 0.0
        %v840 = vsel %vm785, %v627, 0.0
        %v841 = vsel %vm785, %v628, 0.0
        %v842 = vsel %vm786, %v629, 0.0
        %v843 = vsel %vm786, %v630, 0.0
        %v844 = vsel %vm787, %v631, 0.0
        %v845 = vsel %vm787, %v632, 0.0
        %v846 = vsel %vm788, %v633, 0.0
        %v847 = vsel %vm788, %v634, 0.0
        %v848 = vsel %vm789, %v635, 0.0
        %v849 = vsel %vm789, %v636, 0.0
        %v850 = vld [vmem:[%s186] sm:$0x3]
        %v851 = vadd.f32 %v790, %v792
        %v852 = vadd.f32 %v851, %v794
        %v853 = vadd.f32 %v852, %v796
        %v854 = vadd.f32 %v853, %v798
        %v855 = vadd.f32 %v854, %v800
        %v856 = vadd.f32 %v855, %v802
        %v857 = vadd.f32 %v856, %v804
        %v858 = vadd.f32 %v857, %v806
        %v859 = vadd.f32 %v858, %v808
        %v860 = vadd.f32 %v859, %v810
        %v861 = vadd.f32 %v860, %v812
        %v862 = vadd.f32 %v861, %v814
        %v863 = vadd.f32 %v862, %v816
        %v864 = vadd.f32 %v863, %v818
        %v865 = vadd.f32 %v864, %v820
        %v866 = vadd.f32 %v865, %v822
        %v867 = vadd.f32 %v866, %v824
        %v868 = vadd.f32 %v867, %v826
        %v869 = vadd.f32 %v868, %v828
        %v870 = vadd.f32 %v869, %v830
        %v871 = vadd.f32 %v870, %v832
        %v872 = vadd.f32 %v871, %v834
        %v873 = vadd.f32 %v872, %v836
        %v874 = vadd.f32 %v873, %v838
        %v875 = vadd.f32 %v874, %v840
        %v876 = vadd.f32 %v875, %v842
        %v877 = vadd.f32 %v876, %v844
        %v878 = vadd.f32 %v877, %v846
        %v879 = vadd.f32 %v878, %v848
        %v880 = vrot.slane %v879, 4
        %v881 = vadd.f32 %v879, %v880
        %v882 = vrot.slane %v881, 2
        %v883 = vadd.f32 %v881, %v882
        %v884 = vrot.slane %v883, 1
        %v885 = vadd.f32 %v883, %v884
        %v886 = vadd.f32 %v791, %v793
        %v887 = vadd.f32 %v886, %v795
        %v888 = vadd.f32 %v887, %v797
        %v889 = vadd.f32 %v888, %v799
        %v890 = vadd.f32 %v889, %v801
        %v891 = vadd.f32 %v890, %v803
        %v892 = vadd.f32 %v891, %v805
        %v893 = vadd.f32 %v892, %v807
        %v894 = vadd.f32 %v893, %v809
        %v895 = vadd.f32 %v894, %v811
        %v896 = vadd.f32 %v895, %v813
        %v897 = vadd.f32 %v896, %v815
        %v898 = vadd.f32 %v897, %v817
        %v899 = vadd.f32 %v898, %v819
        %v900 = vadd.f32 %v899, %v821
        %v901 = vadd.f32 %v900, %v823
        %v902 = vadd.f32 %v901, %v825
        %v903 = vadd.f32 %v902, %v827
        %v904 = vadd.f32 %v903, %v829
        %v905 = vadd.f32 %v904, %v831
        %v906 = vadd.f32 %v905, %v833
        %v907 = vadd.f32 %v906, %v835
        %v908 = vadd.f32 %v907, %v837
        %v909 = vadd.f32 %v908, %v839
        %v910 = vadd.f32 %v909, %v841
        %v911 = vadd.f32 %v910, %v843
        %v912 = vadd.f32 %v911, %v845
        %v913 = vadd.f32 %v912, %v847
        %v914 = vadd.f32 %v913, %v849
        %v915 = vrot.slane %v914, 4
        %v916 = vadd.f32 %v914, %v915
        %v917 = vrot.slane %v916, 2
        %v918 = vadd.f32 %v916, %v917
        %v919 = vrot.slane %v918, 1
        %v920 = vadd.f32 %v918, %v919
        %v923 = vcombine.low %v885, %v920
        %v925 = vunpack.c.l.s4 1966171168
        %v926 = vunpack.c.0.s8 %v925
        %v927 = vlaneseq
        %v928 = vshrl.u32 %v927, 7
        %v929 = vsub.s32 %v926, %v928
        %v930 = vrot.slane %v923, %v929
        %v932 = vunpack.c.l.s4 1966171168
        %v933 = vunpack.c.0.s8 %v932
        %v934 = vlaneseq
        %v935 = vshrl.u32 %v934, 7
        %v936 = vsub.s32 %v933, %v935
        %v937 = vrot.slane %v930, %v936
        %v939 = vadd.f32 %v850, %v937
        %v940 = vlaneseq
        %vm941 = vcmp.ge.s32.totalorder %v940, 0
        %vm942 = vcmp.lt.s32.totalorder %v940, 256
        %vm943 = vmand %vm941, %vm942
        %944 = vst.msk [vmem:[%s186] sm:$0x3] %vm943, %v939
        // Predicated region
        $region37: #{tpu_custom_call.1} parent=31 // pred_check
          %p945 = pneg %p198
        $region38: #{tpu_custom_call.1} parent=31 // pred_check_branch
          %947 = sbr.rel (%p945) target = $region40
        $region39: #{tpu_custom_call.1} parent=31 // pred_region
          %v948 = vld [vmem:[%s186] sm:$0x3]
          %v949 = vmul.f32 %v948, 0.0044444446
          %950 = vst.msk [vmem:[%s186] sm:$0x3] %vm943, %v949
        $region40: #{tpu_custom_call.1} parent=31 // pred_fallthru
          _
        %s951 = sand.u32 %s107, 1
        %s952 = scalar_lea.sflag [#allocation3], %s951
        %s953 = sand.u32 %s107, 1
        %s954 = smul.addr %s953, 2
        %s955 = scalar_lea.vmem [#allocation2], %s954
        // Predicated region
        $region41: #{tpu_custom_call.1} parent=31 // pred_check
          %p956 = pneg %p117
        $region42: #{tpu_custom_call.1} parent=31 // pred_check_branch
          %958 = sbr.rel (%p956) target = $region44
        $region43: #{tpu_custom_call.1} parent=31 // pred_region
          %s960 = ssub.s32 32, 32
          %961 = vsyncadd %s952, %s960
          %s962 = smul.addr %s21, 2
          %s963 = smul.addr %s962, 16
          %s964 = scalar_lea.hbm %s3, %s963
          %s966 = sshll.u32 %s955, 4
          %s967 = int_to_ptr.vmem [resolvable:$true] %s966
          %969 = dma.vmem_to_hbm [thread:$0]  %s967, 32, %s964, %s952
        $region44: #{tpu_custom_call.1} parent=31 // pred_fallthru
          _
      $region32: #{tpu_custom_call.1} parent=5 // pred_fallthru
        _
      %p970 = scmp.le.s32.totalorder 2, %s12
      // Predicated region
      $region45: #{tpu_custom_call.1} parent=5 // pred_check
        %p971 = pneg %p970
      $region46: #{tpu_custom_call.1} parent=5 // pred_check_branch
        %973 = sbr.rel (%p971) target = $region48
      $region47: #{tpu_custom_call.1} parent=5 // pred_region
        %s974 = ssub.s32 %s12, 2
        // Predicated region
        $region49: #{tpu_custom_call.1} parent=47 // pred_check
          %p975 = pneg %p123
        $region50: #{tpu_custom_call.1} parent=47 // pred_check_branch
          %977 = sbr.rel (%p975) target = $region52
        $region51: #{tpu_custom_call.1} parent=47 // pred_region
          %s978 = sand.u32 %s108, 1
          %s979 = scalar_lea.sflag [#allocation3], %s978
          %s980 = sand.u32 %s108, 1
          %s981 = smul.addr %s980, 2
          %s982 = scalar_lea.vmem [#allocation2], %s981
          %983 = dma.done %s979, 32
        $region52: #{tpu_custom_call.1} parent=47 // pred_fallthru
          _
      $region48: #{tpu_custom_call.1} parent=5 // pred_fallthru
        _
    $region6: #{tpu_custom_call.1} parent=1 // loop_footer
      %s16 = sadd.s32 1, %s12
    $region7: #{tpu_custom_call.1} parent=1 // loop_footer_branch
      %11 = sbr.rel target = $region3
    $region8: #{tpu_custom_call.1} parent=1 // loop_exit
      _
    %984 = vsyncpa [#allocation3], 1
    %s985 = scalar_lea.sflag [#allocation3], 1
    %986 = vsyncpa %s985, 1

</llo_original>
